<compile_context>
chip_gen: v5e
topology: v5e:2x2
jax: 0.10.0
libtpu: 0.0.40
codegen_flags: <defaults>
</compile_context>

<pallas_src>
import numpy as np
import jax
import jax.numpy as jnp
from jax.experimental import pallas as pl
from jax.experimental.pallas import tpu as pltpu

N_FEATURES = 32            # `n_features` is a free variable in the reference module; fixed here.
_LANES = 128               # TPU vreg lane width
_ROW_QUANTUM = 1024        # batch-row quantum: keeps blocks sublane-aligned for any F <= 128
_DEFAULT_TILE_ROWS = 32768  # batch rows per grid step (4 MiB of real f32 traffic @ F=32)


def _round_up(x, m):
    return ((x + m - 1) // m) * m


def _linear_kernel(x_ref, w_ref, b_ref, o_ref):
    # x_ref: (rows_blk, 128) VMEM  -- lane-dense tile, rpl sample rows per lane-row
    # w_ref: (128, rpl)      VMEM  -- block-diagonal weight, resident across grid steps
    # b_ref: (1, 1)          SMEM  -- scalar bias
    # o_ref: (rows_blk, rpl) VMEM  -- row r, col j = <samples[r*rpl + j], w>
    y = jnp.dot(
        x_ref[...],
        w_ref[...],
        preferred_element_type=jnp.float32,
        precision=jax.lax.Precision.HIGHEST,   # exact f32 accumulate, like nn.Linear
    )
    o_ref[...] = (y + b_ref[0, 0]).astype(o_ref.dtype)


def linear_regression_forward(samples, weight, bias, *, tile_rows=_DEFAULT_TILE_ROWS):
    """samples: (B, F), weight: (1, F), bias: (1,) -> (B, 1)."""
    B, F = samples.shape
    out_dtype = samples.dtype

    if F > _LANES:
        # TODO(synk): n_features > 128 would need a K-tiled contraction; not needed for this module.
        raise NotImplementedError("linear_regression_forward supports n_features <= 128")

    # Pad features to the next power of two (a divisor of 128) so an integer
    # number of sample rows fits per 128-lane row.  No-op for F = 32.
    f_pad = max(1, 1 << (F - 1).bit_length())
    rpl = _LANES // f_pad                       # sample rows packed per lane-row
    if f_pad != F:
        samples = jnp.pad(samples, ((0, 0), (0, f_pad - F)))
        weight = jnp.pad(weight, ((0, 0), (0, f_pad - F)))

    # ---- choose batch tiling ------------------------------------------------
    bp0 = _round_up(B, _ROW_QUANTUM)
    tb = _round_up(min(max(tile_rows, _ROW_QUANTUM), bp0), _ROW_QUANTUM)
    if bp0 >= 2 * _ROW_QUANTUM:
        # Guarantee >= 2 grid steps so "parallel" can split tiles across v7x's 2 TCs.
        tb = min(tb, _round_up((bp0 + 1) // 2, _ROW_QUANTUM))
    bp = _round_up(bp0, tb)                     # padded batch, divisible by tb
    grid = (bp // tb,)

    if bp != B:
        samples = jnp.pad(samples, ((0, bp - B), (0, 0)))

    # Lane-dense view: (bp, f_pad) -> (bp/rpl, 128).  Free row-major reshape.
    x2d = samples.reshape(bp // rpl, _LANES)
    rows_blk = tb // rpl                        # sublanes per streamed block (>= 256)

    # Block-diagonal weight (128, rpl): column j holds w in lanes [j*f_pad, (j+1)*f_pad).
    w_bd = jnp.kron(
        jnp.eye(rpl, dtype=jnp.float32),
        weight.astype(jnp.float32).reshape(f_pad, 1),
    )
    bias2d = bias.reshape(1, 1).astype(jnp.float32)

    out = pl.pallas_call(
        _linear_kernel,
        out_shape=jax.ShapeDtypeStruct((bp // rpl, rpl), out_dtype),
        grid_spec=pltpu.PrefetchScalarGridSpec(
            num_scalar_prefetch=0,
            grid=grid,
            in_specs=[
                # Lane-dense batch tile; double-buffered by the Pallas pipeline.
                pl.BlockSpec((rows_blk, _LANES), lambda i: (i, 0)),
                # Weight: constant index map -> DMA'd once, VMEM-resident.
                pl.BlockSpec((_LANES, rpl), lambda i: (0, 0)),
                # Bias: scalar in SMEM (no padded VMEM tile, no vector load).
                pl.BlockSpec(memory_space=pltpu.MemorySpace.SMEM),
            ],
            out_specs=pl.BlockSpec((rows_blk, rpl), lambda i: (i, 0)),
        ),
        compiler_params=pltpu.CompilerParams(
            # Batch tiles are independent -> shard across v7x's 2 TensorCores.
            dimension_semantics=("parallel",),
            # ~16 MiB peak working set at the 32768-row default tile; raise the
            # scoped limit explicitly so v5e (16 MiB default) compiles it too.
            vmem_limit_bytes=32 * 1024 * 1024,
        ),
    )(x2d, w_bd, bias2d)

    # (bp/rpl, rpl) -> (bp, 1) is a free row-major reshape; drop padded rows.
    return out.reshape(bp, 1)[:B]


if __name__ == "__main__":
    key = jax.random.PRNGKey(0)
    k_x, k_w, k_b, k_x2 = jax.random.split(key, 4)

    # Deterministic parameter init (mimics nn.Linear's uniform(-1/sqrt(F), 1/sqrt(F)))
    bound = 1.0 / (N_FEATURES ** 0.5)
    weight = jax.random.uniform(
        k_w, (1, N_FEATURES), minval=-bound, maxval=bound, dtype=jnp.float32
    )
    bias = jax.random.uniform(k_b, (1,), minval=-bound, maxval=bound, dtype=jnp.float32)

    def ref_fwd(x):
        # float64 host reference for a tight tolerance check.
        return (
            np.asarray(x, np.float64) @ np.asarray(weight, np.float64).T
            + np.asarray(bias, np.float64)
        )

    # --- Small demo shape (single tile) ---
    batch = 8
    samples = jax.random.normal(k_x, (batch, N_FEATURES), dtype=jnp.float32)
    out = jax.block_until_ready(linear_regression_forward(samples, weight, bias))
    assert out.shape == (batch, 1)
    assert np.allclose(np.asarray(out), ref_fwd(samples), atol=1e-5, rtol=1e-5)

    # --- Ragged batch exercising the multi-tile path (grid == 2, v7x dual-TC split) ---
    batch2 = 2500
    samples2 = jax.random.normal(k_x2, (batch2, N_FEATURES), dtype=jnp.float32)
    out2 = jax.block_until_ready(linear_regression_forward(samples2, weight, bias))
    assert out2.shape == (batch2, 1)
    assert np.allclose(np.asarray(out2), ref_fwd(samples2), atol=1e-5, rtol=1e-5)

    print("KERNEL_OK")
</pallas_src>

<mosaic_0001>
module attributes {stable_mosaic.version = 11 : i64} {
  func.func @_linear_kernel(%arg0: i32, %arg1: memref<256x128xf32, #tpu.memory_space<vmem>>, %arg2: memref<128x4xf32, #tpu.memory_space<vmem>>, %arg3: memref<1x1xf32, #tpu.memory_space<smem>>, %arg4: memref<256x4xf32, #tpu.memory_space<vmem>>) attributes {dimension_semantics = [#tpu.dimension_semantics<parallel>], iteration_bounds = array<i64: 1>, scalar_prefetch = 0 : i64, scratch_operands = 0 : i64, tpu.core_type = #tpu.core_type<tc>, window_params = [{transform_indices = @transform_0, window_bounds = array<i64: 256, 128>}, {pipeline_mode = #tpu.pipeline_mode<synchronous>, transform_indices = @transform_1, window_bounds = array<i64: 128, 4>}, {transform_indices = @transform_2, window_bounds = array<i64: 1, 1>}, {transform_indices = @transform_3, window_bounds = array<i64: 256, 4>}]} {
    %c0 = arith.constant 0 : index
    %c0_0 = arith.constant 0 : index
    %0 = vector.load %arg1[%c0, %c0_0] : memref<256x128xf32, #tpu.memory_space<vmem>>, vector<256x128xf32>
    %c0_1 = arith.constant 0 : index
    %c0_2 = arith.constant 0 : index
    %1 = vector.load %arg2[%c0_1, %c0_2] : memref<128x4xf32, #tpu.memory_space<vmem>>, vector<128x4xf32>
    %cst = arith.constant dense<0.000000e+00> : vector<256x4xf32>
    %2 = tpu.matmul %0, %1, %cst {dimension_numbers = #tpu.dot_dimension_numbers<[1], [0], [0], [1], [0, 0, 1, 1], [], []>, precision = #tpu.contract_precision<fp32>} : vector<256x128xf32>, vector<128x4xf32>, vector<256x4xf32> -> vector<256x4xf32>
    %c0_3 = arith.constant 0 : index
    %c0_4 = arith.constant 0 : index
    %3 = memref.load %arg3[%c0_3, %c0_4] : memref<1x1xf32, #tpu.memory_space<smem>>
    %4 = vector.broadcast %3 : f32 to vector<256x4xf32>
    %5 = arith.addf %2, %4 : vector<256x4xf32>
    %c0_5 = arith.constant 0 : index
    %c0_6 = arith.constant 0 : index
    %6 = vector.load %arg4[%c0_5, %c0_6] : memref<256x4xf32, #tpu.memory_space<vmem>>, vector<256x4xf32>
    tpu.vector_store %arg4[%c0_5, %c0_6], %5 {strides = array<i32>} : memref<256x4xf32, #tpu.memory_space<vmem>>, vector<256x4xf32>,
    return
  }
  func.func @transform_0(%arg0: i32) -> (i32, i32) {
    %c0_i32 = arith.constant 0 : i32
    %c0_i32_0 = arith.constant 0 : i32
    return %arg0, %c0_i32 : i32, i32
  }
  func.func @transform_1(%arg0: i32) -> (i32, i32) {
    %c0_i32 = arith.constant 0 : i32
    %c0_i32_0 = arith.constant 0 : i32
    %c0_i32_1 = arith.constant 0 : i32
    return %c0_i32, %c0_i32_0 : i32, i32
  }
  func.func @transform_2(%arg0: i32) -> (i32, i32) {
    %c0_i32 = arith.constant 0 : i32
    %c0_i32_0 = arith.constant 0 : i32
    %c0_i32_1 = arith.constant 0 : i32
    return %c0_i32, %c0_i32_0 : i32, i32
  }
  func.func @transform_3(%arg0: i32) -> (i32, i32) {
    %c0_i32 = arith.constant 0 : i32
    %c0_i32_0 = arith.constant 0 : i32
    return %arg0, %c0_i32 : i32, i32
  }
}

</mosaic_0001>

<llo_original>
// kernel: tpu_custom_call.1
$region0: #{tpu_custom_call.1}
  #allocation0 [shape = 'u32[]', space=smem, size = 0x4, offset = 0x4, fixed_abs, tag = 'smem constant byte address 0x4 - core index']
  #allocation1 [shape = 'u32[72,128]{1,0:T(1,128)}', space=vmem, size = 0x9000, scoped, tag = 'internal scratch']
  #allocation2 [shape = 'f32[1,1]{1,0:T(1,128)S(6)}', space=smem, size = 0x200, scoped, tag = 'scoped memory for tpu_custom_call.1']
  %s0 = inlined_call_operand.hbm [shape: f32[256,128], index: 0, kind: input, shape index: {}]
  %s1 = inlined_call_operand.vmem [shape: f32[128,4], index: 1, kind: input, shape index: {}]
  %s2 = inlined_call_operand.<no memory space> [shape: f32[1,1], index: 2, kind: input, shape index: {}]
  %s3 = inlined_call_operand.vmem [shape: f32[256,4], index: 3, kind: output, shape index: {}]
  %s4 = sld [smem:[#allocation0]]
  $region26: #{tpu_custom_call.1} parent=0
    _
  %s6 = ssub.s32 1, %s4
  %s7 = scalar_select 0, %s6, %s4
  %8 = sst [smem:[#allocation2]] %s2
  $region1: #{tpu_custom_call.1} parent=0
    #allocation3 [shape = 'u8[131072]{0}', space=vmem, size = 0x20000, scoped, tag = 'input window, operand 0, single buffered']
    #allocation4 [shape = 's32[1]{0}', space=sflag, size = 0x4, scoped, tag = 'scoped memory for tpu_custom_call.1']
    %9 = vsyncpa [#allocation4], 0
    // Predicated region
    $region2: #{tpu_custom_call.1} parent=1 // pred_check
      _
    $region3: #{tpu_custom_call.1} parent=1 // pred_check_branch
      %11 = sbr.rel (0) target = $region5
    $region4: #{tpu_custom_call.1} parent=1 // pred_region
      %13 = vsyncadd [#allocation4], 0
      %s14 = sshll.u32 %s0, 4
      %s15 = int_to_ptr.hbm [resolvable:$true] %s14
      %s16 = sshll.u32 [#allocation3], 4
      %s17 = int_to_ptr.vmem [resolvable:$true] %s16
      %22 = dma.hbm_to_vmem [thread:$0]  %s15, 4096, %s17, [#allocation4], 128, 128, 8
    $region5: #{tpu_custom_call.1} parent=1 // pred_fallthru
      _
    // Predicated region
    $region6: #{tpu_custom_call.1} parent=1 // pred_check
      _
    $region7: #{tpu_custom_call.1} parent=1 // pred_check_branch
      %24 = sbr.rel (0) target = $region9
    $region8: #{tpu_custom_call.1} parent=1 // pred_region
      _
    $region9: #{tpu_custom_call.1} parent=1 // pred_fallthru
      _
    // Predicated region
    $region10: #{tpu_custom_call.1} parent=1 // pred_check
      _
    $region11: #{tpu_custom_call.1} parent=1 // pred_check_branch
      %26 = sbr.rel (0) target = $region13
    $region12: #{tpu_custom_call.1} parent=1 // pred_region
      _
    $region13: #{tpu_custom_call.1} parent=1 // pred_fallthru
      _
    // Predicated region
    $region14: #{tpu_custom_call.1} parent=1 // pred_check
      _
    $region15: #{tpu_custom_call.1} parent=1 // pred_check_branch
      %28 = sbr.rel (0) target = $region17
    $region16: #{tpu_custom_call.1} parent=1 // pred_region
      %30 = dma.done [#allocation4], 4096
    $region17: #{tpu_custom_call.1} parent=1 // pred_fallthru
      _
    %v31 = vld [vmem:[#allocation3] sm:$0xff]
    %v32 = vld [vmem:[#allocation3 + $0x8] sm:$0xff]
    %v33 = vld [vmem:[#allocation3 + $0x10] sm:$0xff]
    %v34 = vld [vmem:[#allocation3 + $0x18] sm:$0xff]
    %v35 = vld [vmem:[#allocation3 + $0x20] sm:$0xff]
    %v36 = vld [vmem:[#allocation3 + $0x28] sm:$0xff]
    %v37 = vld [vmem:[#allocation3 + $0x30] sm:$0xff]
    %v38 = vld [vmem:[#allocation3 + $0x38] sm:$0xff]
    %v39 = vld [vmem:[#allocation3 + $0x40] sm:$0xff]
    %v40 = vld [vmem:[#allocation3 + $0x48] sm:$0xff]
    %v41 = vld [vmem:[#allocation3 + $0x50] sm:$0xff]
    %v42 = vld [vmem:[#allocation3 + $0x58] sm:$0xff]
    %v43 = vld [vmem:[#allocation3 + $0x60] sm:$0xff]
    %v44 = vld [vmem:[#allocation3 + $0x68] sm:$0xff]
    %v45 = vld [vmem:[#allocation3 + $0x70] sm:$0xff]
    %v46 = vld [vmem:[#allocation3 + $0x78] sm:$0xff]
    %v47 = vld [vmem:[#allocation3 + $0x80] sm:$0xff]
    %v48 = vld [vmem:[#allocation3 + $0x88] sm:$0xff]
    %v49 = vld [vmem:[#allocation3 + $0x90] sm:$0xff]
    %v50 = vld [vmem:[#allocation3 + $0x98] sm:$0xff]
    %v51 = vld [vmem:[#allocation3 + $0xa0] sm:$0xff]
    %v52 = vld [vmem:[#allocation3 + $0xa8] sm:$0xff]
    %v53 = vld [vmem:[#allocation3 + $0xb0] sm:$0xff]
    %v54 = vld [vmem:[#allocation3 + $0xb8] sm:$0xff]
    %v55 = vld [vmem:[#allocation3 + $0xc0] sm:$0xff]
    %v56 = vld [vmem:[#allocation3 + $0xc8] sm:$0xff]
    %v57 = vld [vmem:[#allocation3 + $0xd0] sm:$0xff]
    %v58 = vld [vmem:[#allocation3 + $0xd8] sm:$0xff]
    %v59 = vld [vmem:[#allocation3 + $0xe0] sm:$0xff]
    %v60 = vld [vmem:[#allocation3 + $0xe8] sm:$0xff]
    %v61 = vld [vmem:[#allocation3 + $0xf0] sm:$0xff]
    %v62 = vld [vmem:[#allocation3 + $0xf8] sm:$0xff]
    %v63 = vld [vmem:[%s1] sm:$0xff]
    %v64 = vld [vmem:[%s1 + $0x8] sm:$0xff]
    %v65 = vld [vmem:[%s1 + $0x10] sm:$0xff]
    %v66 = vld [vmem:[%s1 + $0x18] sm:$0xff]
    %v67 = vld [vmem:[%s1 + $0x20] sm:$0xff]
    %v68 = vld [vmem:[%s1 + $0x28] sm:$0xff]
    %v69 = vld [vmem:[%s1 + $0x30] sm:$0xff]
    %v70 = vld [vmem:[%s1 + $0x38] sm:$0xff]
    %v71 = vld [vmem:[%s1 + $0x40] sm:$0xff]
    %v72 = vld [vmem:[%s1 + $0x48] sm:$0xff]
    %v73 = vld [vmem:[%s1 + $0x50] sm:$0xff]
    %v74 = vld [vmem:[%s1 + $0x58] sm:$0xff]
    %v75 = vld [vmem:[%s1 + $0x60] sm:$0xff]
    %v76 = vld [vmem:[%s1 + $0x68] sm:$0xff]
    %v77 = vld [vmem:[%s1 + $0x70] sm:$0xff]
    %v78 = vld [vmem:[%s1 + $0x78] sm:$0xff]
    %s79 = sld [smem:[#allocation2]]
    %v80 = vstv %s79
    %v81 = vand.u32 %v78, 4294901760
    %82 = vmatpush.msra.mxu0 %v81
    %v83 = vand.u32 %v77, 4294901760
    %84 = vmatpush.msra.mxu0 %v83
    %v85 = vand.u32 %v76, 4294901760
    %86 = vmatpush.msra.mxu0 %v85
    %v87 = vand.u32 %v75, 4294901760
    %88 = vmatpush.msra.mxu0 %v87
    %v89 = vand.u32 %v74, 4294901760
    %90 = vmatpush.msra.mxu0 %v89
    %v91 = vand.u32 %v73, 4294901760
    %92 = vmatpush.msra.mxu0 %v91
    %v93 = vand.u32 %v72, 4294901760
    %94 = vmatpush.msra.mxu0 %v93
    %v95 = vand.u32 %v71, 4294901760
    %96 = vmatpush.msra.mxu0 %v95
    %v97 = vand.u32 %v70, 4294901760
    %98 = vmatpush.msra.mxu0 %v97
    %v99 = vand.u32 %v69, 4294901760
    %100 = vmatpush.msra.mxu0 %v99
    %v101 = vand.u32 %v68, 4294901760
    %102 = vmatpush.msra.mxu0 %v101
    %v103 = vand.u32 %v67, 4294901760
    %104 = vmatpush.msra.mxu0 %v103
    %v105 = vand.u32 %v66, 4294901760
    %106 = vmatpush.msra.mxu0 %v105
    %v107 = vand.u32 %v65, 4294901760
    %108 = vmatpush.msra.mxu0 %v107
    %v109 = vand.u32 %v64, 4294901760
    %110 = vmatpush.msra.mxu0 %v109
    %v111 = vand.u32 %v63, 4294901760
    %112 = vmatpush.msra.mxu0 %v111
    %v113 = vand.u32 %v31, 4294901760
    %v114 = vsub.f32 %v31, %v113
    %v115 = vand.u32 %v114, 4294901760
    %v116 = vsub.f32 %v114, %v115
    %v117 = vand.u32 %v116, 4294901760
    %118 = vmatmul.f32.gmra.mxu0 %v117
    %v119 = vpop.f32.mrf.mxu0
    %v120 = vadd.f32 %v80, %v119
    %v121 = vand.u32 %v32, 4294901760
    %v122 = vsub.f32 %v32, %v121
    %v123 = vand.u32 %v122, 4294901760
    %v124 = vsub.f32 %v122, %v123
    %v125 = vand.u32 %v124, 4294901760
    %126 = vmatmul.f32.gmra.mxu0 %v125
    %v127 = vpop.f32.mrf.mxu0
    %v128 = vadd.f32 %v80, %v127
    %v129 = vand.u32 %v33, 4294901760
    %v130 = vsub.f32 %v33, %v129
    %v131 = vand.u32 %v130, 4294901760
    %v132 = vsub.f32 %v130, %v131
    %v133 = vand.u32 %v132, 4294901760
    %134 = vmatmul.f32.gmra.mxu0 %v133
    %v135 = vpop.f32.mrf.mxu0
    %v136 = vadd.f32 %v80, %v135
    %v137 = vand.u32 %v34, 4294901760
    %v138 = vsub.f32 %v34, %v137
    %v139 = vand.u32 %v138, 4294901760
    %v140 = vsub.f32 %v138, %v139
    %v141 = vand.u32 %v140, 4294901760
    %142 = vmatmul.f32.gmra.mxu0 %v141
    %v143 = vpop.f32.mrf.mxu0
    %v144 = vadd.f32 %v80, %v143
    %v145 = vand.u32 %v35, 4294901760
    %v146 = vsub.f32 %v35, %v145
    %v147 = vand.u32 %v146, 4294901760
    %v148 = vsub.f32 %v146, %v147
    %v149 = vand.u32 %v148, 4294901760
    %150 = vmatmul.f32.gmra.mxu0 %v149
    %v151 = vpop.f32.mrf.mxu0
    %v152 = vadd.f32 %v80, %v151
    %v153 = vand.u32 %v36, 4294901760
    %v154 = vsub.f32 %v36, %v153
    %v155 = vand.u32 %v154, 4294901760
    %v156 = vsub.f32 %v154, %v155
    %v157 = vand.u32 %v156, 4294901760
    %158 = vmatmul.f32.gmra.mxu0 %v157
    %v159 = vpop.f32.mrf.mxu0
    %v160 = vadd.f32 %v80, %v159
    %v161 = vand.u32 %v37, 4294901760
    %v162 = vsub.f32 %v37, %v161
    %v163 = vand.u32 %v162, 4294901760
    %v164 = vsub.f32 %v162, %v163
    %v165 = vand.u32 %v164, 4294901760
    %166 = vmatmul.f32.gmra.mxu0 %v165
    %v167 = vpop.f32.mrf.mxu0
    %v168 = vadd.f32 %v80, %v167
    %v169 = vand.u32 %v38, 4294901760
    %v170 = vsub.f32 %v38, %v169
    %v171 = vand.u32 %v170, 4294901760
    %v172 = vsub.f32 %v170, %v171
    %v173 = vand.u32 %v172, 4294901760
    %174 = vmatmul.f32.gmra.mxu0 %v173
    %v175 = vpop.f32.mrf.mxu0
    %v176 = vadd.f32 %v80, %v175
    %v177 = vand.u32 %v39, 4294901760
    %v178 = vsub.f32 %v39, %v177
    %v179 = vand.u32 %v178, 4294901760
    %v180 = vsub.f32 %v178, %v179
    %v181 = vand.u32 %v180, 4294901760
    %182 = vmatmul.f32.gmra.mxu0 %v181
    %v183 = vpop.f32.mrf.mxu0
    %v184 = vadd.f32 %v80, %v183
    %v185 = vand.u32 %v40, 4294901760
    %v186 = vsub.f32 %v40, %v185
    %v187 = vand.u32 %v186, 4294901760
    %v188 = vsub.f32 %v186, %v187
    %v189 = vand.u32 %v188, 4294901760
    %190 = vmatmul.f32.gmra.mxu0 %v189
    %v191 = vpop.f32.mrf.mxu0
    %v192 = vadd.f32 %v80, %v191
    %v193 = vand.u32 %v41, 4294901760
    %v194 = vsub.f32 %v41, %v193
    %v195 = vand.u32 %v194, 4294901760
    %v196 = vsub.f32 %v194, %v195
    %v197 = vand.u32 %v196, 4294901760
    %198 = vmatmul.f32.gmra.mxu0 %v197
    %v199 = vpop.f32.mrf.mxu0
    %v200 = vadd.f32 %v80, %v199
    %v201 = vand.u32 %v42, 4294901760
    %v202 = vsub.f32 %v42, %v201
    %v203 = vand.u32 %v202, 4294901760
    %v204 = vsub.f32 %v202, %v203
    %v205 = vand.u32 %v204, 4294901760
    %206 = vmatmul.f32.gmra.mxu0 %v205
    %v207 = vpop.f32.mrf.mxu0
    %v208 = vadd.f32 %v80, %v207
    %v209 = vand.u32 %v43, 4294901760
    %v210 = vsub.f32 %v43, %v209
    %v211 = vand.u32 %v210, 4294901760
    %v212 = vsub.f32 %v210, %v211
    %v213 = vand.u32 %v212, 4294901760
    %214 = vmatmul.f32.gmra.mxu0 %v213
    %v215 = vpop.f32.mrf.mxu0
    %v216 = vadd.f32 %v80, %v215
    %v217 = vand.u32 %v44, 4294901760
    %v218 = vsub.f32 %v44, %v217
    %v219 = vand.u32 %v218, 4294901760
    %v220 = vsub.f32 %v218, %v219
    %v221 = vand.u32 %v220, 4294901760
    %222 = vmatmul.f32.gmra.mxu0 %v221
    %v223 = vpop.f32.mrf.mxu0
    %v224 = vadd.f32 %v80, %v223
    %v225 = vand.u32 %v45, 4294901760
    %v226 = vsub.f32 %v45, %v225
    %v227 = vand.u32 %v226, 4294901760
    %v228 = vsub.f32 %v226, %v227
    %v229 = vand.u32 %v228, 4294901760
    %230 = vmatmul.f32.gmra.mxu0 %v229
    %v231 = vpop.f32.mrf.mxu0
    %v232 = vadd.f32 %v80, %v231
    %v233 = vand.u32 %v46, 4294901760
    %v234 = vsub.f32 %v46, %v233
    %v235 = vand.u32 %v234, 4294901760
    %v236 = vsub.f32 %v234, %v235
    %v237 = vand.u32 %v236, 4294901760
    %238 = vmatmul.f32.gmra.mxu0 %v237
    %v239 = vpop.f32.mrf.mxu0
    %v240 = vadd.f32 %v80, %v239
    %v241 = vand.u32 %v47, 4294901760
    %v242 = vsub.f32 %v47, %v241
    %v243 = vand.u32 %v242, 4294901760
    %v244 = vsub.f32 %v242, %v243
    %v245 = vand.u32 %v244, 4294901760
    %246 = vmatmul.f32.gmra.mxu0 %v245
    %v247 = vpop.f32.mrf.mxu0
    %v248 = vadd.f32 %v80, %v247
    %v249 = vand.u32 %v48, 4294901760
    %v250 = vsub.f32 %v48, %v249
    %v251 = vand.u32 %v250, 4294901760
    %v252 = vsub.f32 %v250, %v251
    %v253 = vand.u32 %v252, 4294901760
    %254 = vmatmul.f32.gmra.mxu0 %v253
    %v255 = vpop.f32.mrf.mxu0
    %v256 = vadd.f32 %v80, %v255
    %v257 = vand.u32 %v49, 4294901760
    %v258 = vsub.f32 %v49, %v257
    %v259 = vand.u32 %v258, 4294901760
    %v260 = vsub.f32 %v258, %v259
    %v261 = vand.u32 %v260, 4294901760
    %262 = vmatmul.f32.gmra.mxu0 %v261
    %v263 = vpop.f32.mrf.mxu0
    %v264 = vadd.f32 %v80, %v263
    %v265 = vand.u32 %v50, 4294901760
    %v266 = vsub.f32 %v50, %v265
    %v267 = vand.u32 %v266, 4294901760
    %v268 = vsub.f32 %v266, %v267
    %v269 = vand.u32 %v268, 4294901760
    %270 = vmatmul.f32.gmra.mxu0 %v269
    %v271 = vpop.f32.mrf.mxu0
    %v272 = vadd.f32 %v80, %v271
    %v273 = vand.u32 %v51, 4294901760
    %v274 = vsub.f32 %v51, %v273
    %v275 = vand.u32 %v274, 4294901760
    %v276 = vsub.f32 %v274, %v275
    %v277 = vand.u32 %v276, 4294901760
    %278 = vmatmul.f32.gmra.mxu0 %v277
    %v279 = vpop.f32.mrf.mxu0
    %v280 = vadd.f32 %v80, %v279
    %v281 = vand.u32 %v52, 4294901760
    %v282 = vsub.f32 %v52, %v281
    %v283 = vand.u32 %v282, 4294901760
    %v284 = vsub.f32 %v282, %v283
    %v285 = vand.u32 %v284, 4294901760
    %286 = vmatmul.f32.gmra.mxu0 %v285
    %v287 = vpop.f32.mrf.mxu0
    %v288 = vadd.f32 %v80, %v287
    %v289 = vand.u32 %v53, 4294901760
    %v290 = vsub.f32 %v53, %v289
    %v291 = vand.u32 %v290, 4294901760
    %v292 = vsub.f32 %v290, %v291
    %v293 = vand.u32 %v292, 4294901760
    %294 = vmatmul.f32.gmra.mxu0 %v293
    %v295 = vpop.f32.mrf.mxu0
    %v296 = vadd.f32 %v80, %v295
    %v297 = vand.u32 %v54, 4294901760
    %v298 = vsub.f32 %v54, %v297
    %v299 = vand.u32 %v298, 4294901760
    %v300 = vsub.f32 %v298, %v299
    %v301 = vand.u32 %v300, 4294901760
    %302 = vmatmul.f32.gmra.mxu0 %v301
    %v303 = vpop.f32.mrf.mxu0
    %v304 = vadd.f32 %v80, %v303
    %v305 = vand.u32 %v55, 4294901760
    %v306 = vsub.f32 %v55, %v305
    %v307 = vand.u32 %v306, 4294901760
    %v308 = vsub.f32 %v306, %v307
    %v309 = vand.u32 %v308, 4294901760
    %310 = vmatmul.f32.gmra.mxu0 %v309
    %v311 = vpop.f32.mrf.mxu0
    %v312 = vadd.f32 %v80, %v311
    %v313 = vand.u32 %v56, 4294901760
    %v314 = vsub.f32 %v56, %v313
    %v315 = vand.u32 %v314, 4294901760
    %v316 = vsub.f32 %v314, %v315
    %v317 = vand.u32 %v316, 4294901760
    %318 = vmatmul.f32.gmra.mxu0 %v317
    %v319 = vpop.f32.mrf.mxu0
    %v320 = vadd.f32 %v80, %v319
    %v321 = vand.u32 %v57, 4294901760
    %v322 = vsub.f32 %v57, %v321
    %v323 = vand.u32 %v322, 4294901760
    %v324 = vsub.f32 %v322, %v323
    %v325 = vand.u32 %v324, 4294901760
    %326 = vmatmul.f32.gmra.mxu0 %v325
    %v327 = vpop.f32.mrf.mxu0
    %v328 = vadd.f32 %v80, %v327
    %v329 = vand.u32 %v58, 4294901760
    %v330 = vsub.f32 %v58, %v329
    %v331 = vand.u32 %v330, 4294901760
    %v332 = vsub.f32 %v330, %v331
    %v333 = vand.u32 %v332, 4294901760
    %334 = vmatmul.f32.gmra.mxu0 %v333
    %v335 = vpop.f32.mrf.mxu0
    %v336 = vadd.f32 %v80, %v335
    %v337 = vand.u32 %v59, 4294901760
    %v338 = vsub.f32 %v59, %v337
    %v339 = vand.u32 %v338, 4294901760
    %v340 = vsub.f32 %v338, %v339
    %v341 = vand.u32 %v340, 4294901760
    %342 = vmatmul.f32.gmra.mxu0 %v341
    %v343 = vpop.f32.mrf.mxu0
    %v344 = vadd.f32 %v80, %v343
    %v345 = vand.u32 %v60, 4294901760
    %v346 = vsub.f32 %v60, %v345
    %v347 = vand.u32 %v346, 4294901760
    %v348 = vsub.f32 %v346, %v347
    %v349 = vand.u32 %v348, 4294901760
    %350 = vmatmul.f32.gmra.mxu0 %v349
    %v351 = vpop.f32.mrf.mxu0
    %v352 = vadd.f32 %v80, %v351
    %v353 = vand.u32 %v61, 4294901760
    %v354 = vsub.f32 %v61, %v353
    %v355 = vand.u32 %v354, 4294901760
    %v356 = vsub.f32 %v354, %v355
    %v357 = vand.u32 %v356, 4294901760
    %358 = vmatmul.f32.gmra.mxu0 %v357
    %v359 = vpop.f32.mrf.mxu0
    %v360 = vadd.f32 %v80, %v359
    %v361 = vand.u32 %v62, 4294901760
    %v362 = vsub.f32 %v62, %v361
    %v363 = vand.u32 %v362, 4294901760
    %v364 = vsub.f32 %v362, %v363
    %v365 = vand.u32 %v364, 4294901760
    %366 = vmatmul.f32.gmra.mxu0 %v365
    %v367 = vpop.f32.mrf.mxu0
    %v368 = vadd.f32 %v80, %v367
    %369 = vdwg.mxu0
    %v370 = vand.u32 %v78, 4294901760
    %v371 = vsub.f32 %v78, %v370
    %v372 = vand.u32 %v371, 4294901760
    %v373 = vsub.f32 %v371, %v372
    %v374 = vand.u32 %v373, 4294901760
    %375 = vmatpush.msra.mxu0 %v374
    %v376 = vand.u32 %v77, 4294901760
    %v377 = vsub.f32 %v77, %v376
    %v378 = vand.u32 %v377, 4294901760
    %v379 = vsub.f32 %v377, %v378
    %v380 = vand.u32 %v379, 4294901760
    %381 = vmatpush.msra.mxu0 %v380
    %v382 = vand.u32 %v76, 4294901760
    %v383 = vsub.f32 %v76, %v382
    %v384 = vand.u32 %v383, 4294901760
    %v385 = vsub.f32 %v383, %v384
    %v386 = vand.u32 %v385, 4294901760
    %387 = vmatpush.msra.mxu0 %v386
    %v388 = vand.u32 %v75, 4294901760
    %v389 = vsub.f32 %v75, %v388
    %v390 = vand.u32 %v389, 4294901760
    %v391 = vsub.f32 %v389, %v390
    %v392 = vand.u32 %v391, 4294901760
    %393 = vmatpush.msra.mxu0 %v392
    %v394 = vand.u32 %v74, 4294901760
    %v395 = vsub.f32 %v74, %v394
    %v396 = vand.u32 %v395, 4294901760
    %v397 = vsub.f32 %v395, %v396
    %v398 = vand.u32 %v397, 4294901760
    %399 = vmatpush.msra.mxu0 %v398
    %v400 = vand.u32 %v73, 4294901760
    %v401 = vsub.f32 %v73, %v400
    %v402 = vand.u32 %v401, 4294901760
    %v403 = vsub.f32 %v401, %v402
    %v404 = vand.u32 %v403, 4294901760
    %405 = vmatpush.msra.mxu0 %v404
    %v406 = vand.u32 %v72, 4294901760
    %v407 = vsub.f32 %v72, %v406
    %v408 = vand.u32 %v407, 4294901760
    %v409 = vsub.f32 %v407, %v408
    %v410 = vand.u32 %v409, 4294901760
    %411 = vmatpush.msra.mxu0 %v410
    %v412 = vand.u32 %v71, 4294901760
    %v413 = vsub.f32 %v71, %v412
    %v414 = vand.u32 %v413, 4294901760
    %v415 = vsub.f32 %v413, %v414
    %v416 = vand.u32 %v415, 4294901760
    %417 = vmatpush.msra.mxu0 %v416
    %v418 = vand.u32 %v70, 4294901760
    %v419 = vsub.f32 %v70, %v418
    %v420 = vand.u32 %v419, 4294901760
    %v421 = vsub.f32 %v419, %v420
    %v422 = vand.u32 %v421, 4294901760
    %423 = vmatpush.msra.mxu0 %v422
    %v424 = vand.u32 %v69, 4294901760
    %v425 = vsub.f32 %v69, %v424
    %v426 = vand.u32 %v425, 4294901760
    %v427 = vsub.f32 %v425, %v426
    %v428 = vand.u32 %v427, 4294901760
    %429 = vmatpush.msra.mxu0 %v428
    %v430 = vand.u32 %v68, 4294901760
    %v431 = vsub.f32 %v68, %v430
    %v432 = vand.u32 %v431, 4294901760
    %v433 = vsub.f32 %v431, %v432
    %v434 = vand.u32 %v433, 4294901760
    %435 = vmatpush.msra.mxu0 %v434
    %v436 = vand.u32 %v67, 4294901760
    %v437 = vsub.f32 %v67, %v436
    %v438 = vand.u32 %v437, 4294901760
    %v439 = vsub.f32 %v437, %v438
    %v440 = vand.u32 %v439, 4294901760
    %441 = vmatpush.msra.mxu0 %v440
    %v442 = vand.u32 %v66, 4294901760
    %v443 = vsub.f32 %v66, %v442
    %v444 = vand.u32 %v443, 4294901760
    %v445 = vsub.f32 %v443, %v444
    %v446 = vand.u32 %v445, 4294901760
    %447 = vmatpush.msra.mxu0 %v446
    %v448 = vand.u32 %v65, 4294901760
    %v449 = vsub.f32 %v65, %v448
    %v450 = vand.u32 %v449, 4294901760
    %v451 = vsub.f32 %v449, %v450
    %v452 = vand.u32 %v451, 4294901760
    %453 = vmatpush.msra.mxu0 %v452
    %v454 = vand.u32 %v64, 4294901760
    %v455 = vsub.f32 %v64, %v454
    %v456 = vand.u32 %v455, 4294901760
    %v457 = vsub.f32 %v455, %v456
    %v458 = vand.u32 %v457, 4294901760
    %459 = vmatpush.msra.mxu0 %v458
    %v460 = vand.u32 %v63, 4294901760
    %v461 = vsub.f32 %v63, %v460
    %v462 = vand.u32 %v461, 4294901760
    %v463 = vsub.f32 %v461, %v462
    %v464 = vand.u32 %v463, 4294901760
    %465 = vmatpush.msra.mxu0 %v464
    %v466 = vand.u32 %v31, 4294901760
    %467 = vmatmul.f32.gmra.mxu0 %v466
    %v468 = vpop.f32.mrf.mxu0
    %v469 = vadd.f32 %v120, %v468
    %v470 = vand.u32 %v32, 4294901760
    %471 = vmatmul.f32.gmra.mxu0 %v470
    %v472 = vpop.f32.mrf.mxu0
    %v473 = vadd.f32 %v128, %v472
    %v474 = vand.u32 %v33, 4294901760
    %475 = vmatmul.f32.gmra.mxu0 %v474
    %v476 = vpop.f32.mrf.mxu0
    %v477 = vadd.f32 %v136, %v476
    %v478 = vand.u32 %v34, 4294901760
    %479 = vmatmul.f32.gmra.mxu0 %v478
    %v480 = vpop.f32.mrf.mxu0
    %v481 = vadd.f32 %v144, %v480
    %v482 = vand.u32 %v35, 4294901760
    %483 = vmatmul.f32.gmra.mxu0 %v482
    %v484 = vpop.f32.mrf.mxu0
    %v485 = vadd.f32 %v152, %v484
    %v486 = vand.u32 %v36, 4294901760
    %487 = vmatmul.f32.gmra.mxu0 %v486
    %v488 = vpop.f32.mrf.mxu0
    %v489 = vadd.f32 %v160, %v488
    %v490 = vand.u32 %v37, 4294901760
    %491 = vmatmul.f32.gmra.mxu0 %v490
    %v492 = vpop.f32.mrf.mxu0
    %v493 = vadd.f32 %v168, %v492
    %v494 = vand.u32 %v38, 4294901760
    %495 = vmatmul.f32.gmra.mxu0 %v494
    %v496 = vpop.f32.mrf.mxu0
    %v497 = vadd.f32 %v176, %v496
    %v498 = vand.u32 %v39, 4294901760
    %499 = vmatmul.f32.gmra.mxu0 %v498
    %v500 = vpop.f32.mrf.mxu0
    %v501 = vadd.f32 %v184, %v500
    %v502 = vand.u32 %v40, 4294901760
    %503 = vmatmul.f32.gmra.mxu0 %v502
    %v504 = vpop.f32.mrf.mxu0
    %v505 = vadd.f32 %v192, %v504
    %v506 = vand.u32 %v41, 4294901760
    %507 = vmatmul.f32.gmra.mxu0 %v506
    %v508 = vpop.f32.mrf.mxu0
    %v509 = vadd.f32 %v200, %v508
    %v510 = vand.u32 %v42, 4294901760
    %511 = vmatmul.f32.gmra.mxu0 %v510
    %v512 = vpop.f32.mrf.mxu0
    %v513 = vadd.f32 %v208, %v512
    %v514 = vand.u32 %v43, 4294901760
    %515 = vmatmul.f32.gmra.mxu0 %v514
    %v516 = vpop.f32.mrf.mxu0
    %v517 = vadd.f32 %v216, %v516
    %v518 = vand.u32 %v44, 4294901760
    %519 = vmatmul.f32.gmra.mxu0 %v518
    %v520 = vpop.f32.mrf.mxu0
    %v521 = vadd.f32 %v224, %v520
    %v522 = vand.u32 %v45, 4294901760
    %523 = vmatmul.f32.gmra.mxu0 %v522
    %v524 = vpop.f32.mrf.mxu0
    %v525 = vadd.f32 %v232, %v524
    %v526 = vand.u32 %v46, 4294901760
    %527 = vmatmul.f32.gmra.mxu0 %v526
    %v528 = vpop.f32.mrf.mxu0
    %v529 = vadd.f32 %v240, %v528
    %v530 = vand.u32 %v47, 4294901760
    %531 = vmatmul.f32.gmra.mxu0 %v530
    %v532 = vpop.f32.mrf.mxu0
    %v533 = vadd.f32 %v248, %v532
    %v534 = vand.u32 %v48, 4294901760
    %535 = vmatmul.f32.gmra.mxu0 %v534
    %v536 = vpop.f32.mrf.mxu0
    %v537 = vadd.f32 %v256, %v536
    %v538 = vand.u32 %v49, 4294901760
    %539 = vmatmul.f32.gmra.mxu0 %v538
    %v540 = vpop.f32.mrf.mxu0
    %v541 = vadd.f32 %v264, %v540
    %v542 = vand.u32 %v50, 4294901760
    %543 = vmatmul.f32.gmra.mxu0 %v542
    %v544 = vpop.f32.mrf.mxu0
    %v545 = vadd.f32 %v272, %v544
    %v546 = vand.u32 %v51, 4294901760
    %547 = vmatmul.f32.gmra.mxu0 %v546
    %v548 = vpop.f32.mrf.mxu0
    %v549 = vadd.f32 %v280, %v548
    %v550 = vand.u32 %v52, 4294901760
    %551 = vmatmul.f32.gmra.mxu0 %v550
    %v552 = vpop.f32.mrf.mxu0
    %v553 = vadd.f32 %v288, %v552
    %v554 = vand.u32 %v53, 4294901760
    %555 = vmatmul.f32.gmra.mxu0 %v554
    %v556 = vpop.f32.mrf.mxu0
    %v557 = vadd.f32 %v296, %v556
    %v558 = vand.u32 %v54, 4294901760
    %559 = vmatmul.f32.gmra.mxu0 %v558
    %v560 = vpop.f32.mrf.mxu0
    %v561 = vadd.f32 %v304, %v560
    %v562 = vand.u32 %v55, 4294901760
    %563 = vmatmul.f32.gmra.mxu0 %v562
    %v564 = vpop.f32.mrf.mxu0
    %v565 = vadd.f32 %v312, %v564
    %v566 = vand.u32 %v56, 4294901760
    %567 = vmatmul.f32.gmra.mxu0 %v566
    %v568 = vpop.f32.mrf.mxu0
    %v569 = vadd.f32 %v320, %v568
    %v570 = vand.u32 %v57, 4294901760
    %571 = vmatmul.f32.gmra.mxu0 %v570
    %v572 = vpop.f32.mrf.mxu0
    %v573 = vadd.f32 %v328, %v572
    %v574 = vand.u32 %v58, 4294901760
    %575 = vmatmul.f32.gmra.mxu0 %v574
    %v576 = vpop.f32.mrf.mxu0
    %v577 = vadd.f32 %v336, %v576
    %v578 = vand.u32 %v59, 4294901760
    %579 = vmatmul.f32.gmra.mxu0 %v578
    %v580 = vpop.f32.mrf.mxu0
    %v581 = vadd.f32 %v344, %v580
    %v582 = vand.u32 %v60, 4294901760
    %583 = vmatmul.f32.gmra.mxu0 %v582
    %v584 = vpop.f32.mrf.mxu0
    %v585 = vadd.f32 %v352, %v584
    %v586 = vand.u32 %v61, 4294901760
    %587 = vmatmul.f32.gmra.mxu0 %v586
    %v588 = vpop.f32.mrf.mxu0
    %v589 = vadd.f32 %v360, %v588
    %v590 = vand.u32 %v62, 4294901760
    %591 = vmatmul.f32.gmra.mxu0 %v590
    %v592 = vpop.f32.mrf.mxu0
    %v593 = vadd.f32 %v368, %v592
    %594 = vdwg.mxu0
    %v595 = vand.u32 %v78, 4294901760
    %v596 = vsub.f32 %v78, %v595
    %597 = vmatpush.msra.mxu0 %v596
    %v598 = vand.u32 %v77, 4294901760
    %v599 = vsub.f32 %v77, %v598
    %600 = vmatpush.msra.mxu0 %v599
    %v601 = vand.u32 %v76, 4294901760
    %v602 = vsub.f32 %v76, %v601
    %603 = vmatpush.msra.mxu0 %v602
    %v604 = vand.u32 %v75, 4294901760
    %v605 = vsub.f32 %v75, %v604
    %606 = vmatpush.msra.mxu0 %v605
    %v607 = vand.u32 %v74, 4294901760
    %v608 = vsub.f32 %v74, %v607
    %609 = vmatpush.msra.mxu0 %v608
    %v610 = vand.u32 %v73, 4294901760
    %v611 = vsub.f32 %v73, %v610
    %612 = vmatpush.msra.mxu0 %v611
    %v613 = vand.u32 %v72, 4294901760
    %v614 = vsub.f32 %v72, %v613
    %615 = vmatpush.msra.mxu0 %v614
    %v616 = vand.u32 %v71, 4294901760
    %v617 = vsub.f32 %v71, %v616
    %618 = vmatpush.msra.mxu0 %v617
    %v619 = vand.u32 %v70, 4294901760
    %v620 = vsub.f32 %v70, %v619
    %621 = vmatpush.msra.mxu0 %v620
    %v622 = vand.u32 %v69, 4294901760
    %v623 = vsub.f32 %v69, %v622
    %624 = vmatpush.msra.mxu0 %v623
    %v625 = vand.u32 %v68, 4294901760
    %v626 = vsub.f32 %v68, %v625
    %627 = vmatpush.msra.mxu0 %v626
    %v628 = vand.u32 %v67, 4294901760
    %v629 = vsub.f32 %v67, %v628
    %630 = vmatpush.msra.mxu0 %v629
    %v631 = vand.u32 %v66, 4294901760
    %v632 = vsub.f32 %v66, %v631
    %633 = vmatpush.msra.mxu0 %v632
    %v634 = vand.u32 %v65, 4294901760
    %v635 = vsub.f32 %v65, %v634
    %636 = vmatpush.msra.mxu0 %v635
    %v637 = vand.u32 %v64, 4294901760
    %v638 = vsub.f32 %v64, %v637
    %639 = vmatpush.msra.mxu0 %v638
    %v640 = vand.u32 %v63, 4294901760
    %v641 = vsub.f32 %v63, %v640
    %642 = vmatpush.msra.mxu0 %v641
    %v643 = vand.u32 %v31, 4294901760
    %v644 = vsub.f32 %v31, %v643
    %645 = vmatmul.f32.gmra.mxu0 %v644
    %v646 = vpop.f32.mrf.mxu0
    %v647 = vadd.f32 %v469, %v646
    %v648 = vand.u32 %v32, 4294901760
    %v649 = vsub.f32 %v32, %v648
    %650 = vmatmul.f32.gmra.mxu0 %v649
    %v651 = vpop.f32.mrf.mxu0
    %v652 = vadd.f32 %v473, %v651
    %v653 = vand.u32 %v33, 4294901760
    %v654 = vsub.f32 %v33, %v653
    %655 = vmatmul.f32.gmra.mxu0 %v654
    %v656 = vpop.f32.mrf.mxu0
    %v657 = vadd.f32 %v477, %v656
    %v658 = vand.u32 %v34, 4294901760
    %v659 = vsub.f32 %v34, %v658
    %660 = vmatmul.f32.gmra.mxu0 %v659
    %v661 = vpop.f32.mrf.mxu0
    %v662 = vadd.f32 %v481, %v661
    %v663 = vand.u32 %v35, 4294901760
    %v664 = vsub.f32 %v35, %v663
    %665 = vmatmul.f32.gmra.mxu0 %v664
    %v666 = vpop.f32.mrf.mxu0
    %v667 = vadd.f32 %v485, %v666
    %v668 = vand.u32 %v36, 4294901760
    %v669 = vsub.f32 %v36, %v668
    %670 = vmatmul.f32.gmra.mxu0 %v669
    %v671 = vpop.f32.mrf.mxu0
    %v672 = vadd.f32 %v489, %v671
    %v673 = vand.u32 %v37, 4294901760
    %v674 = vsub.f32 %v37, %v673
    %675 = vmatmul.f32.gmra.mxu0 %v674
    %v676 = vpop.f32.mrf.mxu0
    %v677 = vadd.f32 %v493, %v676
    %v678 = vand.u32 %v38, 4294901760
    %v679 = vsub.f32 %v38, %v678
    %680 = vmatmul.f32.gmra.mxu0 %v679
    %v681 = vpop.f32.mrf.mxu0
    %v682 = vadd.f32 %v497, %v681
    %v683 = vand.u32 %v39, 4294901760
    %v684 = vsub.f32 %v39, %v683
    %685 = vmatmul.f32.gmra.mxu0 %v684
    %v686 = vpop.f32.mrf.mxu0
    %v687 = vadd.f32 %v501, %v686
    %v688 = vand.u32 %v40, 4294901760
    %v689 = vsub.f32 %v40, %v688
    %690 = vmatmul.f32.gmra.mxu0 %v689
    %v691 = vpop.f32.mrf.mxu0
    %v692 = vadd.f32 %v505, %v691
    %v693 = vand.u32 %v41, 4294901760
    %v694 = vsub.f32 %v41, %v693
    %695 = vmatmul.f32.gmra.mxu0 %v694
    %v696 = vpop.f32.mrf.mxu0
    %v697 = vadd.f32 %v509, %v696
    %v698 = vand.u32 %v42, 4294901760
    %v699 = vsub.f32 %v42, %v698
    %700 = vmatmul.f32.gmra.mxu0 %v699
    %v701 = vpop.f32.mrf.mxu0
    %v702 = vadd.f32 %v513, %v701
    %v703 = vand.u32 %v43, 4294901760
    %v704 = vsub.f32 %v43, %v703
    %705 = vmatmul.f32.gmra.mxu0 %v704
    %v706 = vpop.f32.mrf.mxu0
    %v707 = vadd.f32 %v517, %v706
    %v708 = vand.u32 %v44, 4294901760
    %v709 = vsub.f32 %v44, %v708
    %710 = vmatmul.f32.gmra.mxu0 %v709
    %v711 = vpop.f32.mrf.mxu0
    %v712 = vadd.f32 %v521, %v711
    %v713 = vand.u32 %v45, 4294901760
    %v714 = vsub.f32 %v45, %v713
    %715 = vmatmul.f32.gmra.mxu0 %v714
    %v716 = vpop.f32.mrf.mxu0
    %v717 = vadd.f32 %v525, %v716
    %v718 = vand.u32 %v46, 4294901760
    %v719 = vsub.f32 %v46, %v718
    %720 = vmatmul.f32.gmra.mxu0 %v719
    %v721 = vpop.f32.mrf.mxu0
    %v722 = vadd.f32 %v529, %v721
    %v723 = vand.u32 %v47, 4294901760
    %v724 = vsub.f32 %v47, %v723
    %725 = vmatmul.f32.gmra.mxu0 %v724
    %v726 = vpop.f32.mrf.mxu0
    %v727 = vadd.f32 %v533, %v726
    %v728 = vand.u32 %v48, 4294901760
    %v729 = vsub.f32 %v48, %v728
    %730 = vmatmul.f32.gmra.mxu0 %v729
    %v731 = vpop.f32.mrf.mxu0
    %v732 = vadd.f32 %v537, %v731
    %v733 = vand.u32 %v49, 4294901760
    %v734 = vsub.f32 %v49, %v733
    %735 = vmatmul.f32.gmra.mxu0 %v734
    %v736 = vpop.f32.mrf.mxu0
    %v737 = vadd.f32 %v541, %v736
    %v738 = vand.u32 %v50, 4294901760
    %v739 = vsub.f32 %v50, %v738
    %740 = vmatmul.f32.gmra.mxu0 %v739
    %v741 = vpop.f32.mrf.mxu0
    %v742 = vadd.f32 %v545, %v741
    %v743 = vand.u32 %v51, 4294901760
    %v744 = vsub.f32 %v51, %v743
    %745 = vmatmul.f32.gmra.mxu0 %v744
    %v746 = vpop.f32.mrf.mxu0
    %v747 = vadd.f32 %v549, %v746
    %v748 = vand.u32 %v52, 4294901760
    %v749 = vsub.f32 %v52, %v748
    %750 = vmatmul.f32.gmra.mxu0 %v749
    %v751 = vpop.f32.mrf.mxu0
    %v752 = vadd.f32 %v553, %v751
    %v753 = vand.u32 %v53, 4294901760
    %v754 = vsub.f32 %v53, %v753
    %755 = vmatmul.f32.gmra.mxu0 %v754
    %v756 = vpop.f32.mrf.mxu0
    %v757 = vadd.f32 %v557, %v756
    %v758 = vand.u32 %v54, 4294901760
    %v759 = vsub.f32 %v54, %v758
    %760 = vmatmul.f32.gmra.mxu0 %v759
    %v761 = vpop.f32.mrf.mxu0
    %v762 = vadd.f32 %v561, %v761
    %v763 = vand.u32 %v55, 4294901760
    %v764 = vsub.f32 %v55, %v763
    %765 = vmatmul.f32.gmra.mxu0 %v764
    %v766 = vpop.f32.mrf.mxu0
    %v767 = vadd.f32 %v565, %v766
    %v768 = vand.u32 %v56, 4294901760
    %v769 = vsub.f32 %v56, %v768
    %770 = vmatmul.f32.gmra.mxu0 %v769
    %v771 = vpop.f32.mrf.mxu0
    %v772 = vadd.f32 %v569, %v771
    %v773 = vand.u32 %v57, 4294901760
    %v774 = vsub.f32 %v57, %v773
    %775 = vmatmul.f32.gmra.mxu0 %v774
    %v776 = vpop.f32.mrf.mxu0
    %v777 = vadd.f32 %v573, %v776
    %v778 = vand.u32 %v58, 4294901760
    %v779 = vsub.f32 %v58, %v778
    %780 = vmatmul.f32.gmra.mxu0 %v779
    %v781 = vpop.f32.mrf.mxu0
    %v782 = vadd.f32 %v577, %v781
    %v783 = vand.u32 %v59, 4294901760
    %v784 = vsub.f32 %v59, %v783
    %785 = vmatmul.f32.gmra.mxu0 %v784
    %v786 = vpop.f32.mrf.mxu0
    %v787 = vadd.f32 %v581, %v786
    %v788 = vand.u32 %v60, 4294901760
    %v789 = vsub.f32 %v60, %v788
    %790 = vmatmul.f32.gmra.mxu0 %v789
    %v791 = vpop.f32.mrf.mxu0
    %v792 = vadd.f32 %v585, %v791
    %v793 = vand.u32 %v61, 4294901760
    %v794 = vsub.f32 %v61, %v793
    %795 = vmatmul.f32.gmra.mxu0 %v794
    %v796 = vpop.f32.mrf.mxu0
    %v797 = vadd.f32 %v589, %v796
    %v798 = vand.u32 %v62, 4294901760
    %v799 = vsub.f32 %v62, %v798
    %800 = vmatmul.f32.gmra.mxu0 %v799
    %v801 = vpop.f32.mrf.mxu0
    %v802 = vadd.f32 %v593, %v801
    %803 = vdwg.mxu0
    %v804 = vand.u32 %v78, 4294901760
    %805 = vmatpush.msra.mxu0 %v804
    %v806 = vand.u32 %v77, 4294901760
    %807 = vmatpush.msra.mxu0 %v806
    %v808 = vand.u32 %v76, 4294901760
    %809 = vmatpush.msra.mxu0 %v808
    %v810 = vand.u32 %v75, 4294901760
    %811 = vmatpush.msra.mxu0 %v810
    %v812 = vand.u32 %v74, 4294901760
    %813 = vmatpush.msra.mxu0 %v812
    %v814 = vand.u32 %v73, 4294901760
    %815 = vmatpush.msra.mxu0 %v814
    %v816 = vand.u32 %v72, 4294901760
    %817 = vmatpush.msra.mxu0 %v816
    %v818 = vand.u32 %v71, 4294901760
    %819 = vmatpush.msra.mxu0 %v818
    %v820 = vand.u32 %v70, 4294901760
    %821 = vmatpush.msra.mxu0 %v820
    %v822 = vand.u32 %v69, 4294901760
    %823 = vmatpush.msra.mxu0 %v822
    %v824 = vand.u32 %v68, 4294901760
    %825 = vmatpush.msra.mxu0 %v824
    %v826 = vand.u32 %v67, 4294901760
    %827 = vmatpush.msra.mxu0 %v826
    %v828 = vand.u32 %v66, 4294901760
    %829 = vmatpush.msra.mxu0 %v828
    %v830 = vand.u32 %v65, 4294901760
    %831 = vmatpush.msra.mxu0 %v830
    %v832 = vand.u32 %v64, 4294901760
    %833 = vmatpush.msra.mxu0 %v832
    %v834 = vand.u32 %v63, 4294901760
    %835 = vmatpush.msra.mxu0 %v834
    %v836 = vand.u32 %v31, 4294901760
    %v837 = vsub.f32 %v31, %v836
    %v838 = vand.u32 %v837, 4294901760
    %839 = vmatmul.f32.gmra.mxu0 %v838
    %v840 = vpop.f32.mrf.mxu0
    %v841 = vadd.f32 %v647, %v840
    %v842 = vand.u32 %v32, 4294901760
    %v843 = vsub.f32 %v32, %v842
    %v844 = vand.u32 %v843, 4294901760
    %845 = vmatmul.f32.gmra.mxu0 %v844
    %v846 = vpop.f32.mrf.mxu0
    %v847 = vadd.f32 %v652, %v846
    %v848 = vand.u32 %v33, 4294901760
    %v849 = vsub.f32 %v33, %v848
    %v850 = vand.u32 %v849, 4294901760
    %851 = vmatmul.f32.gmra.mxu0 %v850
    %v852 = vpop.f32.mrf.mxu0
    %v853 = vadd.f32 %v657, %v852
    %v854 = vand.u32 %v34, 4294901760
    %v855 = vsub.f32 %v34, %v854
    %v856 = vand.u32 %v855, 4294901760
    %857 = vmatmul.f32.gmra.mxu0 %v856
    %v858 = vpop.f32.mrf.mxu0
    %v859 = vadd.f32 %v662, %v858
    %v860 = vand.u32 %v35, 4294901760
    %v861 = vsub.f32 %v35, %v860
    %v862 = vand.u32 %v861, 4294901760
    %863 = vmatmul.f32.gmra.mxu0 %v862
    %v864 = vpop.f32.mrf.mxu0
    %v865 = vadd.f32 %v667, %v864
    %v866 = vand.u32 %v36, 4294901760
    %v867 = vsub.f32 %v36, %v866
    %v868 = vand.u32 %v867, 4294901760
    %869 = vmatmul.f32.gmra.mxu0 %v868
    %v870 = vpop.f32.mrf.mxu0
    %v871 = vadd.f32 %v672, %v870
    %v872 = vand.u32 %v37, 4294901760
    %v873 = vsub.f32 %v37, %v872
    %v874 = vand.u32 %v873, 4294901760
    %875 = vmatmul.f32.gmra.mxu0 %v874
    %v876 = vpop.f32.mrf.mxu0
    %v877 = vadd.f32 %v677, %v876
    %v878 = vand.u32 %v38, 4294901760
    %v879 = vsub.f32 %v38, %v878
    %v880 = vand.u32 %v879, 4294901760
    %881 = vmatmul.f32.gmra.mxu0 %v880
    %v882 = vpop.f32.mrf.mxu0
    %v883 = vadd.f32 %v682, %v882
    %v884 = vand.u32 %v39, 4294901760
    %v885 = vsub.f32 %v39, %v884
    %v886 = vand.u32 %v885, 4294901760
    %887 = vmatmul.f32.gmra.mxu0 %v886
    %v888 = vpop.f32.mrf.mxu0
    %v889 = vadd.f32 %v687, %v888
    %v890 = vand.u32 %v40, 4294901760
    %v891 = vsub.f32 %v40, %v890
    %v892 = vand.u32 %v891, 4294901760
    %893 = vmatmul.f32.gmra.mxu0 %v892
    %v894 = vpop.f32.mrf.mxu0
    %v895 = vadd.f32 %v692, %v894
    %v896 = vand.u32 %v41, 4294901760
    %v897 = vsub.f32 %v41, %v896
    %v898 = vand.u32 %v897, 4294901760
    %899 = vmatmul.f32.gmra.mxu0 %v898
    %v900 = vpop.f32.mrf.mxu0
    %v901 = vadd.f32 %v697, %v900
    %v902 = vand.u32 %v42, 4294901760
    %v903 = vsub.f32 %v42, %v902
    %v904 = vand.u32 %v903, 4294901760
    %905 = vmatmul.f32.gmra.mxu0 %v904
    %v906 = vpop.f32.mrf.mxu0
    %v907 = vadd.f32 %v702, %v906
    %v908 = vand.u32 %v43, 4294901760
    %v909 = vsub.f32 %v43, %v908
    %v910 = vand.u32 %v909, 4294901760
    %911 = vmatmul.f32.gmra.mxu0 %v910
    %v912 = vpop.f32.mrf.mxu0
    %v913 = vadd.f32 %v707, %v912
    %v914 = vand.u32 %v44, 4294901760
    %v915 = vsub.f32 %v44, %v914
    %v916 = vand.u32 %v915, 4294901760
    %917 = vmatmul.f32.gmra.mxu0 %v916
    %v918 = vpop.f32.mrf.mxu0
    %v919 = vadd.f32 %v712, %v918
    %v920 = vand.u32 %v45, 4294901760
    %v921 = vsub.f32 %v45, %v920
    %v922 = vand.u32 %v921, 4294901760
    %923 = vmatmul.f32.gmra.mxu0 %v922
    %v924 = vpop.f32.mrf.mxu0
    %v925 = vadd.f32 %v717, %v924
    %v926 = vand.u32 %v46, 4294901760
    %v927 = vsub.f32 %v46, %v926
    %v928 = vand.u32 %v927, 4294901760
    %929 = vmatmul.f32.gmra.mxu0 %v928
    %v930 = vpop.f32.mrf.mxu0
    %v931 = vadd.f32 %v722, %v930
    %v932 = vand.u32 %v47, 4294901760
    %v933 = vsub.f32 %v47, %v932
    %v934 = vand.u32 %v933, 4294901760
    %935 = vmatmul.f32.gmra.mxu0 %v934
    %v936 = vpop.f32.mrf.mxu0
    %v937 = vadd.f32 %v727, %v936
    %v938 = vand.u32 %v48, 4294901760
    %v939 = vsub.f32 %v48, %v938
    %v940 = vand.u32 %v939, 4294901760
    %941 = vmatmul.f32.gmra.mxu0 %v940
    %v942 = vpop.f32.mrf.mxu0
    %v943 = vadd.f32 %v732, %v942
    %v944 = vand.u32 %v49, 4294901760
    %v945 = vsub.f32 %v49, %v944
    %v946 = vand.u32 %v945, 4294901760
    %947 = vmatmul.f32.gmra.mxu0 %v946
    %v948 = vpop.f32.mrf.mxu0
    %v949 = vadd.f32 %v737, %v948
    %v950 = vand.u32 %v50, 4294901760
    %v951 = vsub.f32 %v50, %v950
    %v952 = vand.u32 %v951, 4294901760
    %953 = vmatmul.f32.gmra.mxu0 %v952
    %v954 = vpop.f32.mrf.mxu0
    %v955 = vadd.f32 %v742, %v954
    %v956 = vand.u32 %v51, 4294901760
    %v957 = vsub.f32 %v51, %v956
    %v958 = vand.u32 %v957, 4294901760
    %959 = vmatmul.f32.gmra.mxu0 %v958
    %v960 = vpop.f32.mrf.mxu0
    %v961 = vadd.f32 %v747, %v960
    %v962 = vand.u32 %v52, 4294901760
    %v963 = vsub.f32 %v52, %v962
    %v964 = vand.u32 %v963, 4294901760
    %965 = vmatmul.f32.gmra.mxu0 %v964
    %v966 = vpop.f32.mrf.mxu0
    %v967 = vadd.f32 %v752, %v966
    %v968 = vand.u32 %v53, 4294901760
    %v969 = vsub.f32 %v53, %v968
    %v970 = vand.u32 %v969, 4294901760
    %971 = vmatmul.f32.gmra.mxu0 %v970
    %v972 = vpop.f32.mrf.mxu0
    %v973 = vadd.f32 %v757, %v972
    %v974 = vand.u32 %v54, 4294901760
    %v975 = vsub.f32 %v54, %v974
    %v976 = vand.u32 %v975, 4294901760
    %977 = vmatmul.f32.gmra.mxu0 %v976
    %v978 = vpop.f32.mrf.mxu0
    %v979 = vadd.f32 %v762, %v978
    %v980 = vand.u32 %v55, 4294901760
    %v981 = vsub.f32 %v55, %v980
    %v982 = vand.u32 %v981, 4294901760
    %983 = vmatmul.f32.gmra.mxu0 %v982
    %v984 = vpop.f32.mrf.mxu0
    %v985 = vadd.f32 %v767, %v984
    %v986 = vand.u32 %v56, 4294901760
    %v987 = vsub.f32 %v56, %v986
    %v988 = vand.u32 %v987, 4294901760
    %989 = vmatmul.f32.gmra.mxu0 %v988
    %v990 = vpop.f32.mrf.mxu0
    %v991 = vadd.f32 %v772, %v990
    %v992 = vand.u32 %v57, 4294901760
    %v993 = vsub.f32 %v57, %v992
    %v994 = vand.u32 %v993, 4294901760
    %995 = vmatmul.f32.gmra.mxu0 %v994
    %v996 = vpop.f32.mrf.mxu0
    %v997 = vadd.f32 %v777, %v996
    %v998 = vand.u32 %v58, 4294901760
    %v999 = vsub.f32 %v58, %v998
    %v1000 = vand.u32 %v999, 4294901760
    %1001 = vmatmul.f32.gmra.mxu0 %v1000
    %v1002 = vpop.f32.mrf.mxu0
    %v1003 = vadd.f32 %v782, %v1002
    %v1004 = vand.u32 %v59, 4294901760
    %v1005 = vsub.f32 %v59, %v1004
    %v1006 = vand.u32 %v1005, 4294901760
    %1007 = vmatmul.f32.gmra.mxu0 %v1006
    %v1008 = vpop.f32.mrf.mxu0
    %v1009 = vadd.f32 %v787, %v1008
    %v1010 = vand.u32 %v60, 4294901760
    %v1011 = vsub.f32 %v60, %v1010
    %v1012 = vand.u32 %v1011, 4294901760
    %1013 = vmatmul.f32.gmra.mxu0 %v1012
    %v1014 = vpop.f32.mrf.mxu0
    %v1015 = vadd.f32 %v792, %v1014
    %v1016 = vand.u32 %v61, 4294901760
    %v1017 = vsub.f32 %v61, %v1016
    %v1018 = vand.u32 %v1017, 4294901760
    %1019 = vmatmul.f32.gmra.mxu0 %v1018
    %v1020 = vpop.f32.mrf.mxu0
    %v1021 = vadd.f32 %v797, %v1020
    %v1022 = vand.u32 %v62, 4294901760
    %v1023 = vsub.f32 %v62, %v1022
    %v1024 = vand.u32 %v1023, 4294901760
    %1025 = vmatmul.f32.gmra.mxu0 %v1024
    %v1026 = vpop.f32.mrf.mxu0
    %v1027 = vadd.f32 %v802, %v1026
    %1028 = vdwg.mxu0
    %v1029 = vand.u32 %v78, 4294901760
    %v1030 = vsub.f32 %v78, %v1029
    %v1031 = vand.u32 %v1030, 4294901760
    %1032 = vmatpush.msra.mxu0 %v1031
    %v1033 = vand.u32 %v77, 4294901760
    %v1034 = vsub.f32 %v77, %v1033
    %v1035 = vand.u32 %v1034, 4294901760
    %1036 = vmatpush.msra.mxu0 %v1035
    %v1037 = vand.u32 %v76, 4294901760
    %v1038 = vsub.f32 %v76, %v1037
    %v1039 = vand.u32 %v1038, 4294901760
    %1040 = vmatpush.msra.mxu0 %v1039
    %v1041 = vand.u32 %v75, 4294901760
    %v1042 = vsub.f32 %v75, %v1041
    %v1043 = vand.u32 %v1042, 4294901760
    %1044 = vmatpush.msra.mxu0 %v1043
    %v1045 = vand.u32 %v74, 4294901760
    %v1046 = vsub.f32 %v74, %v1045
    %v1047 = vand.u32 %v1046, 4294901760
    %1048 = vmatpush.msra.mxu0 %v1047
    %v1049 = vand.u32 %v73, 4294901760
    %v1050 = vsub.f32 %v73, %v1049
    %v1051 = vand.u32 %v1050, 4294901760
    %1052 = vmatpush.msra.mxu0 %v1051
    %v1053 = vand.u32 %v72, 4294901760
    %v1054 = vsub.f32 %v72, %v1053
    %v1055 = vand.u32 %v1054, 4294901760
    %1056 = vmatpush.msra.mxu0 %v1055
    %v1057 = vand.u32 %v71, 4294901760
    %v1058 = vsub.f32 %v71, %v1057
    %v1059 = vand.u32 %v1058, 4294901760
    %1060 = vmatpush.msra.mxu0 %v1059
    %v1061 = vand.u32 %v70, 4294901760
    %v1062 = vsub.f32 %v70, %v1061
    %v1063 = vand.u32 %v1062, 4294901760
    %1064 = vmatpush.msra.mxu0 %v1063
    %v1065 = vand.u32 %v69, 4294901760
    %v1066 = vsub.f32 %v69, %v1065
    %v1067 = vand.u32 %v1066, 4294901760
    %1068 = vmatpush.msra.mxu0 %v1067
    %v1069 = vand.u32 %v68, 4294901760
    %v1070 = vsub.f32 %v68, %v1069
    %v1071 = vand.u32 %v1070, 4294901760
    %1072 = vmatpush.msra.mxu0 %v1071
    %v1073 = vand.u32 %v67, 4294901760
    %v1074 = vsub.f32 %v67, %v1073
    %v1075 = vand.u32 %v1074, 4294901760
    %1076 = vmatpush.msra.mxu0 %v1075
    %v1077 = vand.u32 %v66, 4294901760
    %v1078 = vsub.f32 %v66, %v1077
    %v1079 = vand.u32 %v1078, 4294901760
    %1080 = vmatpush.msra.mxu0 %v1079
    %v1081 = vand.u32 %v65, 4294901760
    %v1082 = vsub.f32 %v65, %v1081
    %v1083 = vand.u32 %v1082, 4294901760
    %1084 = vmatpush.msra.mxu0 %v1083
    %v1085 = vand.u32 %v64, 4294901760
    %v1086 = vsub.f32 %v64, %v1085
    %v1087 = vand.u32 %v1086, 4294901760
    %1088 = vmatpush.msra.mxu0 %v1087
    %v1089 = vand.u32 %v63, 4294901760
    %v1090 = vsub.f32 %v63, %v1089
    %v1091 = vand.u32 %v1090, 4294901760
    %1092 = vmatpush.msra.mxu0 %v1091
    %v1093 = vand.u32 %v31, 4294901760
    %1094 = vmatmul.f32.gmra.mxu0 %v1093
    %v1095 = vpop.f32.mrf.mxu0
    %v1096 = vadd.f32 %v841, %v1095
    %v1097 = vand.u32 %v32, 4294901760
    %1098 = vmatmul.f32.gmra.mxu0 %v1097
    %v1099 = vpop.f32.mrf.mxu0
    %v1100 = vadd.f32 %v847, %v1099
    %v1101 = vand.u32 %v33, 4294901760
    %1102 = vmatmul.f32.gmra.mxu0 %v1101
    %v1103 = vpop.f32.mrf.mxu0
    %v1104 = vadd.f32 %v853, %v1103
    %v1105 = vand.u32 %v34, 4294901760
    %1106 = vmatmul.f32.gmra.mxu0 %v1105
    %v1107 = vpop.f32.mrf.mxu0
    %v1108 = vadd.f32 %v859, %v1107
    %v1109 = vand.u32 %v35, 4294901760
    %1110 = vmatmul.f32.gmra.mxu0 %v1109
    %v1111 = vpop.f32.mrf.mxu0
    %v1112 = vadd.f32 %v865, %v1111
    %v1113 = vand.u32 %v36, 4294901760
    %1114 = vmatmul.f32.gmra.mxu0 %v1113
    %v1115 = vpop.f32.mrf.mxu0
    %v1116 = vadd.f32 %v871, %v1115
    %v1117 = vand.u32 %v37, 4294901760
    %1118 = vmatmul.f32.gmra.mxu0 %v1117
    %v1119 = vpop.f32.mrf.mxu0
    %v1120 = vadd.f32 %v877, %v1119
    %v1121 = vand.u32 %v38, 4294901760
    %1122 = vmatmul.f32.gmra.mxu0 %v1121
    %v1123 = vpop.f32.mrf.mxu0
    %v1124 = vadd.f32 %v883, %v1123
    %v1125 = vand.u32 %v39, 4294901760
    %1126 = vmatmul.f32.gmra.mxu0 %v1125
    %v1127 = vpop.f32.mrf.mxu0
    %v1128 = vadd.f32 %v889, %v1127
    %v1129 = vand.u32 %v40, 4294901760
    %1130 = vmatmul.f32.gmra.mxu0 %v1129
    %v1131 = vpop.f32.mrf.mxu0
    %v1132 = vadd.f32 %v895, %v1131
    %v1133 = vand.u32 %v41, 4294901760
    %1134 = vmatmul.f32.gmra.mxu0 %v1133
    %v1135 = vpop.f32.mrf.mxu0
    %v1136 = vadd.f32 %v901, %v1135
    %v1137 = vand.u32 %v42, 4294901760
    %1138 = vmatmul.f32.gmra.mxu0 %v1137
    %v1139 = vpop.f32.mrf.mxu0
    %v1140 = vadd.f32 %v907, %v1139
    %v1141 = vand.u32 %v43, 4294901760
    %1142 = vmatmul.f32.gmra.mxu0 %v1141
    %v1143 = vpop.f32.mrf.mxu0
    %v1144 = vadd.f32 %v913, %v1143
    %v1145 = vand.u32 %v44, 4294901760
    %1146 = vmatmul.f32.gmra.mxu0 %v1145
    %v1147 = vpop.f32.mrf.mxu0
    %v1148 = vadd.f32 %v919, %v1147
    %v1149 = vand.u32 %v45, 4294901760
    %1150 = vmatmul.f32.gmra.mxu0 %v1149
    %v1151 = vpop.f32.mrf.mxu0
    %v1152 = vadd.f32 %v925, %v1151
    %v1153 = vand.u32 %v46, 4294901760
    %1154 = vmatmul.f32.gmra.mxu0 %v1153
    %v1155 = vpop.f32.mrf.mxu0
    %v1156 = vadd.f32 %v931, %v1155
    %v1157 = vand.u32 %v47, 4294901760
    %1158 = vmatmul.f32.gmra.mxu0 %v1157
    %v1159 = vpop.f32.mrf.mxu0
    %v1160 = vadd.f32 %v937, %v1159
    %v1161 = vand.u32 %v48, 4294901760
    %1162 = vmatmul.f32.gmra.mxu0 %v1161
    %v1163 = vpop.f32.mrf.mxu0
    %v1164 = vadd.f32 %v943, %v1163
    %v1165 = vand.u32 %v49, 4294901760
    %1166 = vmatmul.f32.gmra.mxu0 %v1165
    %v1167 = vpop.f32.mrf.mxu0
    %v1168 = vadd.f32 %v949, %v1167
    %v1169 = vand.u32 %v50, 4294901760
    %1170 = vmatmul.f32.gmra.mxu0 %v1169
    %v1171 = vpop.f32.mrf.mxu0
    %v1172 = vadd.f32 %v955, %v1171
    %v1173 = vand.u32 %v51, 4294901760
    %1174 = vmatmul.f32.gmra.mxu0 %v1173
    %v1175 = vpop.f32.mrf.mxu0
    %v1176 = vadd.f32 %v961, %v1175
    %v1177 = vand.u32 %v52, 4294901760
    %1178 = vmatmul.f32.gmra.mxu0 %v1177
    %v1179 = vpop.f32.mrf.mxu0
    %v1180 = vadd.f32 %v967, %v1179
    %v1181 = vand.u32 %v53, 4294901760
    %1182 = vmatmul.f32.gmra.mxu0 %v1181
    %v1183 = vpop.f32.mrf.mxu0
    %v1184 = vadd.f32 %v973, %v1183
    %v1185 = vand.u32 %v54, 4294901760
    %1186 = vmatmul.f32.gmra.mxu0 %v1185
    %v1187 = vpop.f32.mrf.mxu0
    %v1188 = vadd.f32 %v979, %v1187
    %v1189 = vand.u32 %v55, 4294901760
    %1190 = vmatmul.f32.gmra.mxu0 %v1189
    %v1191 = vpop.f32.mrf.mxu0
    %v1192 = vadd.f32 %v985, %v1191
    %v1193 = vand.u32 %v56, 4294901760
    %1194 = vmatmul.f32.gmra.mxu0 %v1193
    %v1195 = vpop.f32.mrf.mxu0
    %v1196 = vadd.f32 %v991, %v1195
    %v1197 = vand.u32 %v57, 4294901760
    %1198 = vmatmul.f32.gmra.mxu0 %v1197
    %v1199 = vpop.f32.mrf.mxu0
    %v1200 = vadd.f32 %v997, %v1199
    %v1201 = vand.u32 %v58, 4294901760
    %1202 = vmatmul.f32.gmra.mxu0 %v1201
    %v1203 = vpop.f32.mrf.mxu0
    %v1204 = vadd.f32 %v1003, %v1203
    %v1205 = vand.u32 %v59, 4294901760
    %1206 = vmatmul.f32.gmra.mxu0 %v1205
    %v1207 = vpop.f32.mrf.mxu0
    %v1208 = vadd.f32 %v1009, %v1207
    %v1209 = vand.u32 %v60, 4294901760
    %1210 = vmatmul.f32.gmra.mxu0 %v1209
    %v1211 = vpop.f32.mrf.mxu0
    %v1212 = vadd.f32 %v1015, %v1211
    %v1213 = vand.u32 %v61, 4294901760
    %1214 = vmatmul.f32.gmra.mxu0 %v1213
    %v1215 = vpop.f32.mrf.mxu0
    %v1216 = vadd.f32 %v1021, %v1215
    %v1217 = vand.u32 %v62, 4294901760
    %1218 = vmatmul.f32.gmra.mxu0 %v1217
    %v1219 = vpop.f32.mrf.mxu0
    %v1220 = vadd.f32 %v1027, %v1219
    %1221 = vdwg.mxu0
    %v1222 = vand.u32 %v78, 4294901760
    %1223 = vmatpush.msra.mxu0 %v1222
    %v1224 = vand.u32 %v77, 4294901760
    %1225 = vmatpush.msra.mxu0 %v1224
    %v1226 = vand.u32 %v76, 4294901760
    %1227 = vmatpush.msra.mxu0 %v1226
    %v1228 = vand.u32 %v75, 4294901760
    %1229 = vmatpush.msra.mxu0 %v1228
    %v1230 = vand.u32 %v74, 4294901760
    %1231 = vmatpush.msra.mxu0 %v1230
    %v1232 = vand.u32 %v73, 4294901760
    %1233 = vmatpush.msra.mxu0 %v1232
    %v1234 = vand.u32 %v72, 4294901760
    %1235 = vmatpush.msra.mxu0 %v1234
    %v1236 = vand.u32 %v71, 4294901760
    %1237 = vmatpush.msra.mxu0 %v1236
    %v1238 = vand.u32 %v70, 4294901760
    %1239 = vmatpush.msra.mxu0 %v1238
    %v1240 = vand.u32 %v69, 4294901760
    %1241 = vmatpush.msra.mxu0 %v1240
    %v1242 = vand.u32 %v68, 4294901760
    %1243 = vmatpush.msra.mxu0 %v1242
    %v1244 = vand.u32 %v67, 4294901760
    %1245 = vmatpush.msra.mxu0 %v1244
    %v1246 = vand.u32 %v66, 4294901760
    %1247 = vmatpush.msra.mxu0 %v1246
    %v1248 = vand.u32 %v65, 4294901760
    %1249 = vmatpush.msra.mxu0 %v1248
    %v1250 = vand.u32 %v64, 4294901760
    %1251 = vmatpush.msra.mxu0 %v1250
    %v1252 = vand.u32 %v63, 4294901760
    %1253 = vmatpush.msra.mxu0 %v1252
    %v1254 = vand.u32 %v31, 4294901760
    %1255 = vmatmul.f32.gmra.mxu0 %v1254
    %v1256 = vpop.f32.mrf.mxu0
    %v1257 = vadd.f32 %v1096, %v1256
    %v1258 = vand.u32 %v32, 4294901760
    %1259 = vmatmul.f32.gmra.mxu0 %v1258
    %v1260 = vpop.f32.mrf.mxu0
    %v1261 = vadd.f32 %v1100, %v1260
    %v1262 = vand.u32 %v33, 4294901760
    %1263 = vmatmul.f32.gmra.mxu0 %v1262
    %v1264 = vpop.f32.mrf.mxu0
    %v1265 = vadd.f32 %v1104, %v1264
    %v1266 = vand.u32 %v34, 4294901760
    %1267 = vmatmul.f32.gmra.mxu0 %v1266
    %v1268 = vpop.f32.mrf.mxu0
    %v1269 = vadd.f32 %v1108, %v1268
    %v1270 = vand.u32 %v35, 4294901760
    %1271 = vmatmul.f32.gmra.mxu0 %v1270
    %v1272 = vpop.f32.mrf.mxu0
    %v1273 = vadd.f32 %v1112, %v1272
    %v1274 = vand.u32 %v36, 4294901760
    %1275 = vmatmul.f32.gmra.mxu0 %v1274
    %v1276 = vpop.f32.mrf.mxu0
    %v1277 = vadd.f32 %v1116, %v1276
    %v1278 = vand.u32 %v37, 4294901760
    %1279 = vmatmul.f32.gmra.mxu0 %v1278
    %v1280 = vpop.f32.mrf.mxu0
    %v1281 = vadd.f32 %v1120, %v1280
    %v1282 = vand.u32 %v38, 4294901760
    %1283 = vmatmul.f32.gmra.mxu0 %v1282
    %v1284 = vpop.f32.mrf.mxu0
    %v1285 = vadd.f32 %v1124, %v1284
    %v1286 = vand.u32 %v39, 4294901760
    %1287 = vmatmul.f32.gmra.mxu0 %v1286
    %v1288 = vpop.f32.mrf.mxu0
    %v1289 = vadd.f32 %v1128, %v1288
    %v1290 = vand.u32 %v40, 4294901760
    %1291 = vmatmul.f32.gmra.mxu0 %v1290
    %v1292 = vpop.f32.mrf.mxu0
    %v1293 = vadd.f32 %v1132, %v1292
    %v1294 = vand.u32 %v41, 4294901760
    %1295 = vmatmul.f32.gmra.mxu0 %v1294
    %v1296 = vpop.f32.mrf.mxu0
    %v1297 = vadd.f32 %v1136, %v1296
    %v1298 = vand.u32 %v42, 4294901760
    %1299 = vmatmul.f32.gmra.mxu0 %v1298
    %v1300 = vpop.f32.mrf.mxu0
    %v1301 = vadd.f32 %v1140, %v1300
    %v1302 = vand.u32 %v43, 4294901760
    %1303 = vmatmul.f32.gmra.mxu0 %v1302
    %v1304 = vpop.f32.mrf.mxu0
    %v1305 = vadd.f32 %v1144, %v1304
    %v1306 = vand.u32 %v44, 4294901760
    %1307 = vmatmul.f32.gmra.mxu0 %v1306
    %v1308 = vpop.f32.mrf.mxu0
    %v1309 = vadd.f32 %v1148, %v1308
    %v1310 = vand.u32 %v45, 4294901760
    %1311 = vmatmul.f32.gmra.mxu0 %v1310
    %v1312 = vpop.f32.mrf.mxu0
    %v1313 = vadd.f32 %v1152, %v1312
    %v1314 = vand.u32 %v46, 4294901760
    %1315 = vmatmul.f32.gmra.mxu0 %v1314
    %v1316 = vpop.f32.mrf.mxu0
    %v1317 = vadd.f32 %v1156, %v1316
    %v1318 = vand.u32 %v47, 4294901760
    %1319 = vmatmul.f32.gmra.mxu0 %v1318
    %v1320 = vpop.f32.mrf.mxu0
    %v1321 = vadd.f32 %v1160, %v1320
    %v1322 = vand.u32 %v48, 4294901760
    %1323 = vmatmul.f32.gmra.mxu0 %v1322
    %v1324 = vpop.f32.mrf.mxu0
    %v1325 = vadd.f32 %v1164, %v1324
    %v1326 = vand.u32 %v49, 4294901760
    %1327 = vmatmul.f32.gmra.mxu0 %v1326
    %v1328 = vpop.f32.mrf.mxu0
    %v1329 = vadd.f32 %v1168, %v1328
    %v1330 = vand.u32 %v50, 4294901760
    %1331 = vmatmul.f32.gmra.mxu0 %v1330
    %v1332 = vpop.f32.mrf.mxu0
    %v1333 = vadd.f32 %v1172, %v1332
    %v1334 = vand.u32 %v51, 4294901760
    %1335 = vmatmul.f32.gmra.mxu0 %v1334
    %v1336 = vpop.f32.mrf.mxu0
    %v1337 = vadd.f32 %v1176, %v1336
    %v1338 = vand.u32 %v52, 4294901760
    %1339 = vmatmul.f32.gmra.mxu0 %v1338
    %v1340 = vpop.f32.mrf.mxu0
    %v1341 = vadd.f32 %v1180, %v1340
    %v1342 = vand.u32 %v53, 4294901760
    %1343 = vmatmul.f32.gmra.mxu0 %v1342
    %v1344 = vpop.f32.mrf.mxu0
    %v1345 = vadd.f32 %v1184, %v1344
    %v1346 = vand.u32 %v54, 4294901760
    %1347 = vmatmul.f32.gmra.mxu0 %v1346
    %v1348 = vpop.f32.mrf.mxu0
    %v1349 = vadd.f32 %v1188, %v1348
    %v1350 = vand.u32 %v55, 4294901760
    %1351 = vmatmul.f32.gmra.mxu0 %v1350
    %v1352 = vpop.f32.mrf.mxu0
    %v1353 = vadd.f32 %v1192, %v1352
    %v1354 = vand.u32 %v56, 4294901760
    %1355 = vmatmul.f32.gmra.mxu0 %v1354
    %v1356 = vpop.f32.mrf.mxu0
    %v1357 = vadd.f32 %v1196, %v1356
    %v1358 = vand.u32 %v57, 4294901760
    %1359 = vmatmul.f32.gmra.mxu0 %v1358
    %v1360 = vpop.f32.mrf.mxu0
    %v1361 = vadd.f32 %v1200, %v1360
    %v1362 = vand.u32 %v58, 4294901760
    %1363 = vmatmul.f32.gmra.mxu0 %v1362
    %v1364 = vpop.f32.mrf.mxu0
    %v1365 = vadd.f32 %v1204, %v1364
    %v1366 = vand.u32 %v59, 4294901760
    %1367 = vmatmul.f32.gmra.mxu0 %v1366
    %v1368 = vpop.f32.mrf.mxu0
    %v1369 = vadd.f32 %v1208, %v1368
    %v1370 = vand.u32 %v60, 4294901760
    %1371 = vmatmul.f32.gmra.mxu0 %v1370
    %v1372 = vpop.f32.mrf.mxu0
    %v1373 = vadd.f32 %v1212, %v1372
    %v1374 = vand.u32 %v61, 4294901760
    %1375 = vmatmul.f32.gmra.mxu0 %v1374
    %v1376 = vpop.f32.mrf.mxu0
    %v1377 = vadd.f32 %v1216, %v1376
    %v1378 = vand.u32 %v62, 4294901760
    %1379 = vmatmul.f32.gmra.mxu0 %v1378
    %v1380 = vpop.f32.mrf.mxu0
    %v1381 = vadd.f32 %v1220, %v1380
    %1382 = vdwg.mxu0
    %vm1383 = vcmask 31744
    %1384 = vst.msk [vmem:[%s3] sm:$0xff] %vm1383, %v1257
    %1385 = vst.msk [vmem:[%s3 + $0x8] sm:$0xff] %vm1383, %v1261
    %1386 = vst.msk [vmem:[%s3 + $0x10] sm:$0xff] %vm1383, %v1265
    %1387 = vst.msk [vmem:[%s3 + $0x18] sm:$0xff] %vm1383, %v1269
    %1388 = vst.msk [vmem:[%s3 + $0x20] sm:$0xff] %vm1383, %v1273
    %1389 = vst.msk [vmem:[%s3 + $0x28] sm:$0xff] %vm1383, %v1277
    %1390 = vst.msk [vmem:[%s3 + $0x30] sm:$0xff] %vm1383, %v1281
    %1391 = vst.msk [vmem:[%s3 + $0x38] sm:$0xff] %vm1383, %v1285
    %1392 = vst.msk [vmem:[%s3 + $0x40] sm:$0xff] %vm1383, %v1289
    %1393 = vst.msk [vmem:[%s3 + $0x48] sm:$0xff] %vm1383, %v1293
    %1394 = vst.msk [vmem:[%s3 + $0x50] sm:$0xff] %vm1383, %v1297
    %1395 = vst.msk [vmem:[%s3 + $0x58] sm:$0xff] %vm1383, %v1301
    %1396 = vst.msk [vmem:[%s3 + $0x60] sm:$0xff] %vm1383, %v1305
    %1397 = vst.msk [vmem:[%s3 + $0x68] sm:$0xff] %vm1383, %v1309
    %1398 = vst.msk [vmem:[%s3 + $0x70] sm:$0xff] %vm1383, %v1313
    %1399 = vst.msk [vmem:[%s3 + $0x78] sm:$0xff] %vm1383, %v1317
    %1400 = vst.msk [vmem:[%s3 + $0x80] sm:$0xff] %vm1383, %v1321
    %1401 = vst.msk [vmem:[%s3 + $0x88] sm:$0xff] %vm1383, %v1325
    %1402 = vst.msk [vmem:[%s3 + $0x90] sm:$0xff] %vm1383, %v1329
    %1403 = vst.msk [vmem:[%s3 + $0x98] sm:$0xff] %vm1383, %v1333
    %1404 = vst.msk [vmem:[%s3 + $0xa0] sm:$0xff] %vm1383, %v1337
    %1405 = vst.msk [vmem:[%s3 + $0xa8] sm:$0xff] %vm1383, %v1341
    %1406 = vst.msk [vmem:[%s3 + $0xb0] sm:$0xff] %vm1383, %v1345
    %1407 = vst.msk [vmem:[%s3 + $0xb8] sm:$0xff] %vm1383, %v1349
    %1408 = vst.msk [vmem:[%s3 + $0xc0] sm:$0xff] %vm1383, %v1353
    %1409 = vst.msk [vmem:[%s3 + $0xc8] sm:$0xff] %vm1383, %v1357
    %1410 = vst.msk [vmem:[%s3 + $0xd0] sm:$0xff] %vm1383, %v1361
    %1411 = vst.msk [vmem:[%s3 + $0xd8] sm:$0xff] %vm1383, %v1365
    %1412 = vst.msk [vmem:[%s3 + $0xe0] sm:$0xff] %vm1383, %v1369
    %1413 = vst.msk [vmem:[%s3 + $0xe8] sm:$0xff] %vm1383, %v1373
    %1414 = vst.msk [vmem:[%s3 + $0xf0] sm:$0xff] %vm1383, %v1377
    %1415 = vst.msk [vmem:[%s3 + $0xf8] sm:$0xff] %vm1383, %v1381
    // Predicated region
    $region18: #{tpu_custom_call.1} parent=1 // pred_check
      _
    $region19: #{tpu_custom_call.1} parent=1 // pred_check_branch
      %1417 = sbr.rel (0) target = $region21
    $region20: #{tpu_custom_call.1} parent=1 // pred_region
      _
    $region21: #{tpu_custom_call.1} parent=1 // pred_fallthru
      _
    // Predicated region
    $region22: #{tpu_custom_call.1} parent=1 // pred_check
      _
    $region23: #{tpu_custom_call.1} parent=1 // pred_check_branch
      %1419 = sbr.rel (0) target = $region25
    $region24: #{tpu_custom_call.1} parent=1 // pred_region
      _
    $region25: #{tpu_custom_call.1} parent=1 // pred_fallthru
      _
    %1420 = vsyncpa [#allocation4], 1

</llo_original>
